<compile_context>
chip_gen: v5e
topology: v5e:2x2
jax: 0.10.0
libtpu: 0.0.40
codegen_flags: <defaults>
</compile_context>

<pallas_src>
import jax
import jax.numpy as jnp
from jax.experimental import pallas as pl
from jax.experimental.pallas import tpu as pltpu

_LANES = 128
_MAX_TILE_ROWS = 512  # 512 x 128 f32 = 256 KiB per buffer; fits v5e/v6e/v7x easily.


def _round_up(x, m):
    return ((x + m - 1) // m) * m


def _bits_to_unit(bits_u32):
    """uint32 random bits -> float32 uniform in [0, 1) via the mantissa trick."""
    mant = (bits_u32 >> jnp.uint32(9)) | jnp.uint32(0x3F800000)   # float in [1, 2)
    return jax.lax.bitcast_convert_type(mant, jnp.float32) - 1.0


def _uniform_sample_kernel(bits_ref, out_ref):
    """sample ~ Uniform(-1, 1), lane-dense tile."""
    u = _bits_to_unit(bits_ref[...])
    out_ref[...] = 2.0 * u - 1.0


def _normal_sample_kernel(bits_ref, out_ref):
    """sample ~ Normal(0, 0.5); Box-Muller using both the cos and sin branch."""
    half = out_ref.shape[0] // 2                       # tile rows are a multiple of 16
    u_a = _bits_to_unit(bits_ref[:half, :])
    u_b = _bits_to_unit(bits_ref[half:, :])
    r = jnp.sqrt(-2.0 * jnp.log(1.0 - u_a))            # 1 - u_a in (0, 1] -> log safe
    theta = (2.0 * jnp.pi) * u_b
    out_ref[:half, :] = 0.5 * (r * jnp.cos(theta))     # Normal(0, 0.5)
    out_ref[half:, :] = 0.5 * (r * jnp.sin(theta))


def _sample_flat(key, total, uniform):
    """Generate `total` samples as a lane-dense [rows, 128] slab via Pallas."""
    rows_needed = max(1, -(-total // _LANES))          # ceil(total / 128)
    # Halves of a tile must stay sublane(8)-aligned -> tile rows multiple of 16.
    if rows_needed <= _MAX_TILE_ROWS:
        tile_rows = _round_up(rows_needed, 16)
        padded_rows = tile_rows
    else:
        tile_rows = _MAX_TILE_ROWS
        padded_rows = _round_up(rows_needed, tile_rows)
    grid = (padded_rows // tile_rows,)

    # Independent uint32 stream per element (no per-tile seed reuse possible).
    bits = jax.random.bits(key, (padded_rows, _LANES), dtype=jnp.uint32)
    kernel = _uniform_sample_kernel if uniform else _normal_sample_kernel

    out = pl.pallas_call(
        kernel,
        out_shape=jax.ShapeDtypeStruct((padded_rows, _LANES), jnp.float32),
        grid=grid,
        in_specs=[pl.BlockSpec((tile_rows, _LANES), lambda i: (i, 0))],
        out_specs=pl.BlockSpec((tile_rows, _LANES), lambda i: (i, 0)),
        compiler_params=pltpu.CompilerParams(
            dimension_semantics=("parallel",),        # v7x: both TCs share tiles
            vmem_limit_bytes=32 * 1024 * 1024,        # sized against v7x's 64 MiB VMEM
        ),
    )(bits)
    return out.reshape(-1)[:total]


def random_policy_forward(x, key, n_traj, action_dim, uniform=False):
    """JAX equivalent of RandomPolicy.forward(x).

    `x` is ignored (exactly like the PyTorch module).  Returns the materialized
    distribution (param0, param1, sample), each of shape (n_traj, action_dim):
      uniform=False: (loc=0, scale=0.5, sample ~ N(0, 0.5))
      uniform=True : (low=-1, high=+1, sample ~ U(-1, 1))
    """
    del x  # forward(x) ignores its input in the reference module
    sample = _sample_flat(key, n_traj * action_dim, uniform)
    sample = sample.reshape(n_traj, action_dim)
    if uniform:
        low = jnp.full((n_traj, action_dim), -1.0, jnp.float32)
        high = jnp.full((n_traj, action_dim), 1.0, jnp.float32)
        return low, high, sample
    loc = jnp.zeros((n_traj, action_dim), jnp.float32)
    scale = jnp.full((n_traj, action_dim), 0.5, jnp.float32)
    return loc, scale, sample


if __name__ == "__main__":
    key = jax.random.PRNGKey(0)
    kx, kg, ku = jax.random.split(key, 3)
    n_traj, action_dim = 8, 32
    batch, feat = 2, 16

    # Example input (ignored by the forward pass, as in the PyTorch module).
    x = jax.random.normal(kx, (batch, feat), dtype=jnp.float32)

    # Gaussian policy (default): Independent(Normal(0, 0.5), 1)
    loc, scale, gauss_sample = random_policy_forward(
        x, kg, n_traj, action_dim, uniform=False
    )
    jax.block_until_ready((loc, scale, gauss_sample))
    assert loc.shape == (n_traj, action_dim) and scale.shape == (n_traj, action_dim)
    assert bool(jnp.all(loc == 0.0)) and bool(jnp.all(scale == 0.5))
    assert gauss_sample.shape == (n_traj, action_dim)
    assert bool(jnp.all(jnp.isfinite(gauss_sample)))

    # Uniform policy: Uniform(-1, 1).expand((n_traj, action_dim))
    low, high, unif_sample = random_policy_forward(
        x, ku, n_traj, action_dim, uniform=True
    )
    jax.block_until_ready((low, high, unif_sample))
    assert unif_sample.shape == (n_traj, action_dim)
    assert bool(jnp.all(low == -1.0)) and bool(jnp.all(high == 1.0))
    assert bool(jnp.all(unif_sample >= -1.0)) and bool(jnp.all(unif_sample < 1.0))

    print("KERNEL_OK")
</pallas_src>

<mosaic_0001>
module attributes {stable_mosaic.version = 11 : i64} {
  func.func @_normal_sample_kernel(%arg0: i32, %arg1: memref<16x128xi32, #tpu.memory_space<vmem>>, %arg2: memref<16x128xf32, #tpu.memory_space<vmem>>) attributes {dimension_semantics = [#tpu.dimension_semantics<parallel>], iteration_bounds = array<i64: 1>, scalar_prefetch = 0 : i64, scratch_operands = 0 : i64, tpu.core_type = #tpu.core_type<tc>, window_params = [{transform_indices = @transform_0, window_bounds = array<i64: 16, 128>}, {transform_indices = @transform_1, window_bounds = array<i64: 16, 128>}]} {
    %c0 = arith.constant 0 : index
    %c0_0 = arith.constant 0 : index
    %0 = vector.load %arg1[%c0, %c0_0] : memref<16x128xi32, #tpu.memory_space<vmem>>, vector<8x128xi32>
    %c9_i32 = arith.constant 9 : i32
    %1 = vector.broadcast %c9_i32 : i32 to vector<8x128xi32>
    %2 = arith.shrui %0, %1 : vector<8x128xi32>
    %c1065353216_i32 = arith.constant 1065353216 : i32
    %3 = vector.broadcast %c1065353216_i32 : i32 to vector<8x128xi32>
    %4 = arith.ori %2, %3 : vector<8x128xi32>
    %5 = tpu.bitcast %4 : vector<8x128xi32> -> vector<8x128xf32>
    %cst = arith.constant 1.000000e+00 : f32
    %6 = vector.broadcast %cst : f32 to vector<8x128xf32>
    %7 = arith.subf %5, %6 : vector<8x128xf32>
    %c8 = arith.constant 8 : index
    %c0_1 = arith.constant 0 : index
    %8 = vector.load %arg1[%c8, %c0_1] : memref<16x128xi32, #tpu.memory_space<vmem>>, vector<8x128xi32>
    %c9_i32_2 = arith.constant 9 : i32
    %9 = vector.broadcast %c9_i32_2 : i32 to vector<8x128xi32>
    %10 = arith.shrui %8, %9 : vector<8x128xi32>
    %c1065353216_i32_3 = arith.constant 1065353216 : i32
    %11 = vector.broadcast %c1065353216_i32_3 : i32 to vector<8x128xi32>
    %12 = arith.ori %10, %11 : vector<8x128xi32>
    %13 = tpu.bitcast %12 : vector<8x128xi32> -> vector<8x128xf32>
    %cst_4 = arith.constant 1.000000e+00 : f32
    %14 = vector.broadcast %cst_4 : f32 to vector<8x128xf32>
    %15 = arith.subf %13, %14 : vector<8x128xf32>
    %cst_5 = arith.constant 1.000000e+00 : f32
    %16 = vector.broadcast %cst_5 : f32 to vector<8x128xf32>
    %17 = arith.subf %16, %7 : vector<8x128xf32>
    %18 = math.log %17 : vector<8x128xf32>
    %cst_6 = arith.constant -2.000000e+00 : f32
    %19 = vector.broadcast %cst_6 : f32 to vector<8x128xf32>
    %20 = arith.mulf %19, %18 : vector<8x128xf32>
    %21 = math.sqrt %20 : vector<8x128xf32>
    %cst_7 = arith.constant 6.28318548 : f32
    %22 = vector.broadcast %cst_7 : f32 to vector<8x128xf32>
    %23 = arith.mulf %22, %15 : vector<8x128xf32>
    %24 = math.cos %23 : vector<8x128xf32>
    %25 = arith.mulf %21, %24 : vector<8x128xf32>
    %cst_8 = arith.constant 5.000000e-01 : f32
    %26 = vector.broadcast %cst_8 : f32 to vector<8x128xf32>
    %27 = arith.mulf %26, %25 : vector<8x128xf32>
    %c0_9 = arith.constant 0 : index
    %c0_10 = arith.constant 0 : index
    %28 = vector.load %arg2[%c0_9, %c0_10] : memref<16x128xf32, #tpu.memory_space<vmem>>, vector<8x128xf32>
    tpu.vector_store %arg2[%c0_9, %c0_10], %27 {strides = array<i32>} : memref<16x128xf32, #tpu.memory_space<vmem>>, vector<8x128xf32>,
    %29 = math.sin %23 : vector<8x128xf32>
    %30 = arith.mulf %21, %29 : vector<8x128xf32>
    %cst_11 = arith.constant 5.000000e-01 : f32
    %31 = vector.broadcast %cst_11 : f32 to vector<8x128xf32>
    %32 = arith.mulf %31, %30 : vector<8x128xf32>
    %c8_12 = arith.constant 8 : index
    %c0_13 = arith.constant 0 : index
    %33 = vector.load %arg2[%c8_12, %c0_13] : memref<16x128xf32, #tpu.memory_space<vmem>>, vector<8x128xf32>
    tpu.vector_store %arg2[%c8_12, %c0_13], %32 {strides = array<i32>} : memref<16x128xf32, #tpu.memory_space<vmem>>, vector<8x128xf32>,
    return
  }
  func.func @transform_0(%arg0: i32) -> (i32, i32) {
    %c0_i32 = arith.constant 0 : i32
    %c0_i32_0 = arith.constant 0 : i32
    return %arg0, %c0_i32 : i32, i32
  }
  func.func @transform_1(%arg0: i32) -> (i32, i32) {
    %c0_i32 = arith.constant 0 : i32
    %c0_i32_0 = arith.constant 0 : i32
    return %arg0, %c0_i32 : i32, i32
  }
}

</mosaic_0001>

<llo_original>
// kernel: tpu_custom_call.1
$region0: #{tpu_custom_call.1}
  #allocation0 [shape = 'u32[]', space=smem, size = 0x4, offset = 0x4, fixed_abs, tag = 'smem constant byte address 0x4 - core index']
  #allocation1 [shape = 'u32[72,128]{1,0:T(1,128)}', space=vmem, size = 0x9000, scoped, tag = 'internal scratch']
  %s0 = inlined_call_operand.hbm [shape: u32[16,128], index: 0, kind: input, shape index: {}]
  %s1 = inlined_call_operand.hbm [shape: f32[16,128], index: 1, kind: output, shape index: {}]
  %s2 = sld [smem:[#allocation0]]
  $region18: #{tpu_custom_call.1} parent=0
    _
  %s4 = ssub.s32 1, %s2
  %s5 = scalar_select 0, %s4, %s2
  $region1: #{tpu_custom_call.1} parent=0
    #allocation2 [shape = 'u8[8192]{0}', space=vmem, size = 0x2000, scoped, tag = 'input window, operand 0, single buffered']
    #allocation3 [shape = 's32[1]{0}', space=sflag, size = 0x4, scoped, tag = 'scoped memory for tpu_custom_call.1']
    #allocation4 [shape = 's32[1]{0}', space=sflag, size = 0x4, scoped, tag = 'scoped memory for tpu_custom_call.1']
    #allocation5 [shape = 'u8[8192]{0}', space=vmem, size = 0x2000, scoped, tag = 'output window, operand 0, single buffered']
    %6 = vsyncpa [#allocation3], 0
    %7 = vsyncpa [#allocation4], 0
    // Predicated region
    $region2: #{tpu_custom_call.1} parent=1 // pred_check
      _
    $region3: #{tpu_custom_call.1} parent=1 // pred_check_branch
      %9 = sbr.rel (0) target = $region5
    $region4: #{tpu_custom_call.1} parent=1 // pred_region
      %11 = vsyncadd [#allocation3], 0
      %s12 = sshll.u32 %s0, 4
      %s13 = int_to_ptr.hbm [resolvable:$true] %s12
      %s14 = sshll.u32 [#allocation2], 4
      %s15 = int_to_ptr.vmem [resolvable:$true] %s14
      %20 = dma.hbm_to_vmem [thread:$0]  %s13, 256, %s15, [#allocation3], 128, 128, 8
    $region5: #{tpu_custom_call.1} parent=1 // pred_fallthru
      _
    // Predicated region
    $region6: #{tpu_custom_call.1} parent=1 // pred_check
      _
    $region7: #{tpu_custom_call.1} parent=1 // pred_check_branch
      %22 = sbr.rel (0) target = $region9
    $region8: #{tpu_custom_call.1} parent=1 // pred_region
      %24 = dma.done [#allocation3], 256
    $region9: #{tpu_custom_call.1} parent=1 // pred_fallthru
      _
    %v25 = vld [vmem:[#allocation2] sm:$0xff]
    %v26 = vshrl.u32 %v25, 9
    %v27 = vor.u32 %v26, 1065353216
    %v29 = vsub.f32 %v27, 1.0
    %v30 = vld [vmem:[#allocation2 + $0x8] sm:$0xff]
    %v31 = vshrl.u32 %v30, 9
    %v32 = vor.u32 %v31, 1065353216
    %v34 = vsub.f32 %v32, 1.0
    %v35 = vsub.f32 1.0, %v29
    %v36 = vlog2.pop %v35
    %v37 = vmul.f32 %v36, 0.6931472
    %v38 = vmul.f32 %v37, -2.0
    %v39 = vrsqrt.pop %v38
    %v40 = vmul.f32 %v39, %v38
    %v41 = vmul.f32 %v40, %v39
    %v42 = vmul.f32 0.5, %v41
    %v43 = vsub.f32 1.5, %v42
    %v44 = vmul.f32 %v39, %v43
    %v45 = vmul.f32 %v38, %v44
    %vm46 = vcmp.eq.f32.partialorder %v38, inf
    %v47 = vsel %vm46, %v38, %v45
    %vm48 = vcmp.eq.f32.partialorder %v38, 0.0
    %v49 = vand.u32 %v38, 2147483648
    %v50 = vsel %vm48, %v49, %v47
    %v51 = vmul.f32 %v34, 6.2831855
    %v52 = vand.u32 2147483647, %v51
    %vm53 = vcmp.le.f32.partialorder %v52, 0.7853982
    %vm54 = vcmp.lt.s32.totalorder %v51, 0
    %v55 = vand.u32 %v51, 2139095040
    %v56 = vshrl.u32 %v55, 23
    %v57 = vsub.s32 %v56, 127
    %v58 = vand.u32 2147483647, %v51
    %v59 = vand.u32 %v58, 8388607
    %v60 = vor.u32 %v59, 8388608
    %v61 = vsub.s32 0, %v60
    %v62 = vadd.s32 %v57, 1
    %vm63 = vcmp.gt.s32.totalorder %v62, 0
    %v64 = vsel %vm63, %v62, 0
    %v65 = vshrl.u32 %v64, 5
    %v66 = vand.u32 %v64, 31
    %v67 = vsub.s32 32, %v66
    %v68 = vshrl.u32 683565275, %v67
    %v69 = vshll.u32 683565275, %v66
    %v70 = vshrl.u32 2475754826, %v67
    %v71 = vor.u32 %v69, %v70
    %v72 = vshll.u32 2475754826, %v66
    %v73 = vshrl.u32 2131351028, %v67
    %v74 = vor.u32 %v72, %v73
    %v75 = vshll.u32 2131351028, %v66
    %v76 = vshrl.u32 2102212464, %v67
    %v77 = vor.u32 %v75, %v76
    %v78 = vshll.u32 2102212464, %v66
    %v79 = vshrl.u32 920167782, %v67
    %v80 = vor.u32 %v78, %v79
    %v81 = vshll.u32 920167782, %v66
    %v82 = vshrl.u32 1326507024, %v67
    %v83 = vor.u32 %v81, %v82
    %vm84 = vcmp.lt.s32.totalorder %v65, 1
    %vm85 = vcmp.lt.s32.totalorder %v65, 2
    %vm86 = vcmp.lt.s32.totalorder %v65, 3
    %vm87 = vcmp.lt.s32.totalorder %v65, 4
    %v88 = vsel %vm84, %v68, %v71
    %v89 = vsel %vm87, %v77, 2102212464
    %v90 = vsel %vm86, %v74, %v89
    %v91 = vsel %vm85, %v88, %v90
    %v92 = vsel %vm84, %v71, %v74
    %v93 = vsel %vm87, %v80, 920167782
    %v94 = vsel %vm86, %v77, %v93
    %v95 = vsel %vm85, %v92, %v94
    %v96 = vsel %vm84, %v74, %v77
    %v97 = vsel %vm87, %v83, 1326507024
    %v98 = vsel %vm86, %v80, %v97
    %v99 = vsel %vm85, %v96, %v98
    %v100 = vshll.u32 %v60, 8
    %v101 = vand.u32 %v100, 65535
    %v102 = vshrl.u32 %v100, 16
    %v103 = vand.u32 %v99, 65535
    %v104 = vshrl.u32 %v99, 16
    %v105 = vmul.u32 %v101, %v103
    %v106 = vmul.u32 %v101, %v104
    %v107 = vmul.u32 %v102, %v103
    %v108 = vmul.u32 %v102, %v104
    %v109 = vshll.u32 %v106, 16
    %v110 = vshrl.u32 %v106, 16
    %v111 = vshll.u32 %v107, 16
    %v112 = vshrl.u32 %v107, 16
    %vm113 = vc.u32 %v105, %v109
    %v114 = vsel %vm113, 1, 0
    %v115 = vadd.s32 %v105, %v109
    %v116 = vadd.s32 %v108, %v114
    %vm117 = vc.u32 %v115, %v111
    %v118 = vsel %vm117, 1, 0
    %v119 = vadd.s32 %v115, %v111
    %v120 = vadd.s32 %v116, %v118
    %v121 = vadd.s32 %v120, %v110
    %v122 = vadd.s32 %v121, %v112
    %v123 = vand.u32 %v100, 65535
    %v124 = vshrl.u32 %v100, 16
    %v125 = vand.u32 %v95, 65535
    %v126 = vshrl.u32 %v95, 16
    %v127 = vmul.u32 %v123, %v125
    %v128 = vmul.u32 %v123, %v126
    %v129 = vmul.u32 %v124, %v125
    %v130 = vmul.u32 %v124, %v126
    %v131 = vshll.u32 %v128, 16
    %v132 = vshrl.u32 %v128, 16
    %v133 = vshll.u32 %v129, 16
    %v134 = vshrl.u32 %v129, 16
    %vm135 = vc.u32 %v127, %v131
    %v136 = vsel %vm135, 1, 0
    %v137 = vadd.s32 %v127, %v131
    %v138 = vadd.s32 %v130, %v136
    %vm139 = vc.u32 %v137, %v133
    %v140 = vsel %vm139, 1, 0
    %v141 = vadd.s32 %v137, %v133
    %v142 = vadd.s32 %v138, %v140
    %v143 = vadd.s32 %v142, %v132
    %v144 = vadd.s32 %v143, %v134
    %v145 = vmul.u32 %v100, %v91
    %v146 = vadd.s32 %v122, %v141
    %vm147 = vc.u32 %v122, %v141
    %v148 = vadd.s32 %v144, 1
    %v149 = vsel %vm147, %v148, %v144
    %v150 = vadd.s32 %v145, %v149
    %v151 = vadd.s32 %v150, 536870912
    %v152 = vshrl.u32 %v151, 30
    %v153 = vshll.u32 %v152, 30
    %v154 = vsub.s32 %v150, %v153
    %vm155 = vcmp.lt.s32.totalorder %v154, 0
    %v156 = vsub.s32 0, %v154
    %v157 = vsel %vm155, %v156, %v154
    %v158 = vclz %v157
    %v159 = vsub.s32 %v158, 2
    %vm160 = vcmp.gt.s32.totalorder 0, %v159
    %v161 = vsel %vm160, 0, %v159
    %v162 = vsub.s32 32, %v161
    %v163 = vshll.u32 %v154, %v161
    %v164 = vshrl.u32 %v146, %v162
    %v165 = vor.u32 %v163, %v164
    %v166 = vsub.s32 4294967266, %v161
    %v167 = vadd.s32 %v166, 127
    %v168 = vshll.u32 %v167, 23
    %v169 = vor.u32 4788187, %v168
    %v170 = vand.u32 2147483647, %v169
    %v172 = vcvt.s32.f32 %v165
    %v173 = vmul.f32 %v172, %v170
    %v174 = vxor.u32 %v173, 2147483648
    %v175 = vsel %vm54, %v174, %v173
    %v176 = vsub.s32 4, %v152
    %v177 = vsel %vm54, %v176, %v152
    %v178 = vsel %vm53, %v51, %v175
    %v179 = vsel %vm53, 0, %v177
    %v180 = vmul.f32 %v178, %v178
    %v181 = vmul.f32 %v180, -0.001358992
    %v182 = vadd.f32 %v181, 0.041655596
    %v183 = vmul.f32 %v180, %v182
    %v184 = vadd.f32 %v183, -0.4999988
    %v185 = vmul.f32 %v180, %v184
    %v186 = vadd.f32 1.0, %v185
    %v187 = vmul.f32 %v178, %v178
    %v188 = vmul.f32 %v187, -0.00019511016
    %v189 = vadd.f32 %v188, 0.008332121
    %v190 = vmul.f32 %v187, %v189
    %v191 = vadd.f32 %v190, -0.16666654
    %v192 = vmul.f32 %v187, %v191
    %v193 = vadd.f32 %v192, 1.0
    %v194 = vmul.f32 %v193, %v178
    %vm195 = vweird.f32 %v51
    %v196 = vand.u32 %v179, 3
    %vm197 = vcmp.lt.s32.totalorder %v196, 2
    %vm198 = vcmp.eq.s32.totalorder %v196, 0
    %v199 = vxor.u32 %v194, 2147483648
    %v200 = vsel %vm198, %v186, %v199
    %vm201 = vcmp.eq.s32.totalorder %v196, 2
    %v202 = vxor.u32 %v186, 2147483648
    %v203 = vsel %vm201, %v202, %v194
    %v204 = vsel %vm197, %v200, %v203
    %v205 = vsel %vm195, nan, %v204
    %v206 = vmul.f32 %v50, %v205
    %v207 = vmul.f32 %v206, 0.5
    %208 = vst [vmem:[#allocation5] sm:$0xff] %v207
    %v209 = vand.u32 2147483647, %v51
    %vm210 = vcmp.le.f32.partialorder %v209, 0.7853982
    %vm211 = vcmp.lt.s32.totalorder %v51, 0
    %v212 = vand.u32 %v51, 2139095040
    %v213 = vshrl.u32 %v212, 23
    %v214 = vsub.s32 %v213, 127
    %v215 = vand.u32 2147483647, %v51
    %v216 = vand.u32 %v215, 8388607
    %v217 = vor.u32 %v216, 8388608
    %v218 = vsub.s32 0, %v217
    %v219 = vadd.s32 %v214, 1
    %vm220 = vcmp.gt.s32.totalorder %v219, 0
    %v221 = vsel %vm220, %v219, 0
    %v222 = vshrl.u32 %v221, 5
    %v223 = vand.u32 %v221, 31
    %v224 = vsub.s32 32, %v223
    %v225 = vshrl.u32 683565275, %v224
    %v226 = vshll.u32 683565275, %v223
    %v227 = vshrl.u32 2475754826, %v224
    %v228 = vor.u32 %v226, %v227
    %v229 = vshll.u32 2475754826, %v223
    %v230 = vshrl.u32 2131351028, %v224
    %v231 = vor.u32 %v229, %v230
    %v232 = vshll.u32 2131351028, %v223
    %v233 = vshrl.u32 2102212464, %v224
    %v234 = vor.u32 %v232, %v233
    %v235 = vshll.u32 2102212464, %v223
    %v236 = vshrl.u32 920167782, %v224
    %v237 = vor.u32 %v235, %v236
    %v238 = vshll.u32 920167782, %v223
    %v239 = vshrl.u32 1326507024, %v224
    %v240 = vor.u32 %v238, %v239
    %vm241 = vcmp.lt.s32.totalorder %v222, 1
    %vm242 = vcmp.lt.s32.totalorder %v222, 2
    %vm243 = vcmp.lt.s32.totalorder %v222, 3
    %vm244 = vcmp.lt.s32.totalorder %v222, 4
    %v245 = vsel %vm241, %v225, %v228
    %v246 = vsel %vm244, %v234, 2102212464
    %v247 = vsel %vm243, %v231, %v246
    %v248 = vsel %vm242, %v245, %v247
    %v249 = vsel %vm241, %v228, %v231
    %v250 = vsel %vm244, %v237, 920167782
    %v251 = vsel %vm243, %v234, %v250
    %v252 = vsel %vm242, %v249, %v251
    %v253 = vsel %vm241, %v231, %v234
    %v254 = vsel %vm244, %v240, 1326507024
    %v255 = vsel %vm243, %v237, %v254
    %v256 = vsel %vm242, %v253, %v255
    %v257 = vshll.u32 %v217, 8
    %v258 = vand.u32 %v257, 65535
    %v259 = vshrl.u32 %v257, 16
    %v260 = vand.u32 %v256, 65535
    %v261 = vshrl.u32 %v256, 16
    %v262 = vmul.u32 %v258, %v260
    %v263 = vmul.u32 %v258, %v261
    %v264 = vmul.u32 %v259, %v260
    %v265 = vmul.u32 %v259, %v261
    %v266 = vshll.u32 %v263, 16
    %v267 = vshrl.u32 %v263, 16
    %v268 = vshll.u32 %v264, 16
    %v269 = vshrl.u32 %v264, 16
    %vm270 = vc.u32 %v262, %v266
    %v271 = vsel %vm270, 1, 0
    %v272 = vadd.s32 %v262, %v266
    %v273 = vadd.s32 %v265, %v271
    %vm274 = vc.u32 %v272, %v268
    %v275 = vsel %vm274, 1, 0
    %v276 = vadd.s32 %v272, %v268
    %v277 = vadd.s32 %v273, %v275
    %v278 = vadd.s32 %v277, %v267
    %v279 = vadd.s32 %v278, %v269
    %v280 = vand.u32 %v257, 65535
    %v281 = vshrl.u32 %v257, 16
    %v282 = vand.u32 %v252, 65535
    %v283 = vshrl.u32 %v252, 16
    %v284 = vmul.u32 %v280, %v282
    %v285 = vmul.u32 %v280, %v283
    %v286 = vmul.u32 %v281, %v282
    %v287 = vmul.u32 %v281, %v283
    %v288 = vshll.u32 %v285, 16
    %v289 = vshrl.u32 %v285, 16
    %v290 = vshll.u32 %v286, 16
    %v291 = vshrl.u32 %v286, 16
    %vm292 = vc.u32 %v284, %v288
    %v293 = vsel %vm292, 1, 0
    %v294 = vadd.s32 %v284, %v288
    %v295 = vadd.s32 %v287, %v293
    %vm296 = vc.u32 %v294, %v290
    %v297 = vsel %vm296, 1, 0
    %v298 = vadd.s32 %v294, %v290
    %v299 = vadd.s32 %v295, %v297
    %v300 = vadd.s32 %v299, %v289
    %v301 = vadd.s32 %v300, %v291
    %v302 = vmul.u32 %v257, %v248
    %v303 = vadd.s32 %v279, %v298
    %vm304 = vc.u32 %v279, %v298
    %v305 = vadd.s32 %v301, 1
    %v306 = vsel %vm304, %v305, %v301
    %v307 = vadd.s32 %v302, %v306
    %v308 = vadd.s32 %v307, 536870912
    %v309 = vshrl.u32 %v308, 30
    %v310 = vshll.u32 %v309, 30
    %v311 = vsub.s32 %v307, %v310
    %vm312 = vcmp.lt.s32.totalorder %v311, 0
    %v313 = vsub.s32 0, %v311
    %v314 = vsel %vm312, %v313, %v311
    %v315 = vclz %v314
    %v316 = vsub.s32 %v315, 2
    %vm317 = vcmp.gt.s32.totalorder 0, %v316
    %v318 = vsel %vm317, 0, %v316
    %v319 = vsub.s32 32, %v318
    %v320 = vshll.u32 %v311, %v318
    %v321 = vshrl.u32 %v303, %v319
    %v322 = vor.u32 %v320, %v321
    %v323 = vsub.s32 4294967266, %v318
    %v324 = vadd.s32 %v323, 127
    %v325 = vshll.u32 %v324, 23
    %v326 = vor.u32 4788187, %v325
    %v327 = vand.u32 2147483647, %v326
    %v329 = vcvt.s32.f32 %v322
    %v330 = vmul.f32 %v329, %v327
    %v331 = vxor.u32 %v330, 2147483648
    %v332 = vsel %vm211, %v331, %v330
    %v333 = vsub.s32 4, %v309
    %v334 = vsel %vm211, %v333, %v309
    %v335 = vsel %vm210, %v51, %v332
    %v336 = vsel %vm210, 0, %v334
    %v337 = vmul.f32 %v335, %v335
    %v338 = vmul.f32 %v337, -0.001358992
    %v339 = vadd.f32 %v338, 0.041655596
    %v340 = vmul.f32 %v337, %v339
    %v341 = vadd.f32 %v340, -0.4999988
    %v342 = vmul.f32 %v337, %v341
    %v343 = vadd.f32 1.0, %v342
    %v344 = vmul.f32 %v335, %v335
    %v345 = vmul.f32 %v344, -0.00019511016
    %v346 = vadd.f32 %v345, 0.008332121
    %v347 = vmul.f32 %v344, %v346
    %v348 = vadd.f32 %v347, -0.16666654
    %v349 = vmul.f32 %v344, %v348
    %v350 = vadd.f32 %v349, 1.0
    %v351 = vmul.f32 %v350, %v335
    %vm352 = vweird.f32 %v51
    %v353 = vadd.s32 %v336, 3
    %v354 = vand.u32 %v353, 3
    %vm355 = vcmp.lt.s32.totalorder %v354, 2
    %vm356 = vcmp.eq.s32.totalorder %v354, 0
    %v357 = vxor.u32 %v351, 2147483648
    %v358 = vsel %vm356, %v343, %v357
    %vm359 = vcmp.eq.s32.totalorder %v354, 2
    %v360 = vxor.u32 %v343, 2147483648
    %v361 = vsel %vm359, %v360, %v351
    %v362 = vsel %vm355, %v358, %v361
    %v363 = vsel %vm352, nan, %v362
    %v364 = vmul.f32 %v50, %v363
    %v365 = vmul.f32 %v364, 0.5
    %366 = vst [vmem:[#allocation5 + $0x8] sm:$0xff] %v365
    // Predicated region
    $region10: #{tpu_custom_call.1} parent=1 // pred_check
      _
    $region11: #{tpu_custom_call.1} parent=1 // pred_check_branch
      %368 = sbr.rel (0) target = $region13
    $region12: #{tpu_custom_call.1} parent=1 // pred_region
      %370 = vsyncadd [#allocation4], 0
      %s371 = sshll.u32 [#allocation5], 4
      %s372 = int_to_ptr.vmem [resolvable:$true] %s371
      %s373 = sshll.u32 %s1, 4
      %s374 = int_to_ptr.hbm [resolvable:$true] %s373
      %379 = dma.vmem_to_hbm [thread:$0]  %s372, 256, %s374, [#allocation4], 128, 128, 8
    $region13: #{tpu_custom_call.1} parent=1 // pred_fallthru
      _
    // Predicated region
    $region14: #{tpu_custom_call.1} parent=1 // pred_check
      _
    $region15: #{tpu_custom_call.1} parent=1 // pred_check_branch
      %381 = sbr.rel (0) target = $region17
    $region16: #{tpu_custom_call.1} parent=1 // pred_region
      %383 = dma.done [#allocation4], 256
    $region17: #{tpu_custom_call.1} parent=1 // pred_fallthru
      _
    %384 = vsyncpa [#allocation3], 1
    %385 = vsyncpa [#allocation4], 1

</llo_original>
